<compile_context>
chip_gen: v7x
topology: tpu7x:2x2x1
jax: 0.10.0
libtpu: 0.0.40
codegen_flags: <defaults>
</compile_context>

<pallas_src>
import functools

import jax
import jax.numpy as jnp
from jax.experimental import pallas as pl
from jax.experimental.pallas import tpu as pltpu


# ---------------------------------------------------------------------------
# Kernel 1: tiled matmul + bias  (QKV projection and output projection)
# ---------------------------------------------------------------------------
def _matmul_bias_kernel(x_ref, w_ref, b_ref, o_ref):
    # x_ref: (TM, K), w_ref: (K, E), b_ref: (1, E) f32, o_ref: (TM, E)
    acc = jnp.dot(x_ref[...], w_ref[...], preferred_element_type=jnp.float32)
    o_ref[...] = (acc + b_ref[...]).astype(o_ref.dtype)


def matmul_bias(x, w, b, *, out_dtype=None, tm=256):
    """x: [M, K], w: [K, E], b: [E] -> [M, E] (bias added in f32)."""
    M, K = x.shape
    K2, E = w.shape
    assert K == K2
    out_dtype = out_dtype if out_dtype is not None else x.dtype

    # Row tile: multiple of 8 (sublane) and small enough to double-buffer
    # comfortably inside the v7x 64 MiB VMEM budget; tiny M -> single block.
    if M <= tm or M % 8 != 0:
        tm_eff = M
    else:
        tm_eff = max(8, (min(tm, M) // 8) * 8)
    grid_m = pl.cdiv(M, tm_eff)

    bias2d = b.reshape(1, E).astype(jnp.float32)

    cost = pl.CostEstimate(
        flops=2 * M * K * E,
        transcendentals=0,
        bytes_accessed=(M * K * x.dtype.itemsize
                        + K * E * w.dtype.itemsize
                        + M * E * jnp.dtype(out_dtype).itemsize),
    )

    return pl.pallas_call(
        _matmul_bias_kernel,
        out_shape=jax.ShapeDtypeStruct((M, E), out_dtype),
        grid_spec=pltpu.PrefetchScalarGridSpec(
            num_scalar_prefetch=0,
            grid=(grid_m,),
            in_specs=[
                pl.BlockSpec((tm_eff, K), lambda i: (i, 0)),
                pl.BlockSpec((K, E), lambda i: (0, 0)),   # weight stays resident
                pl.BlockSpec((1, E), lambda i: (0, 0)),   # bias stays resident
            ],
            out_specs=pl.BlockSpec((tm_eff, E), lambda i: (i, 0)),
        ),
        compiler_params=pltpu.CompilerParams(
            dimension_semantics=("parallel",),
            vmem_limit_bytes=64 * 1024 * 1024,
        ),
        cost_estimate=cost,
    )(x, w, bias2d)


# ---------------------------------------------------------------------------
# Kernel 2: fused attention core, one (batch, head) per grid step
# ---------------------------------------------------------------------------
def _attention_kernel(q_ref, k_ref, v_ref, o_ref, *, scale):
    q = q_ref[0]            # [N, Dh]
    k = k_ref[0]            # [N, Dh]
    v = v_ref[0]            # [N, Dh]

    # scores = (q @ k^T) * scale, accumulated in f32 on the MXU.
    s = jax.lax.dot_general(
        q, k, (((1,), (1,)), ((), ())),
        preferred_element_type=jnp.float32,
    ) * scale               # [N, N] f32

    # Numerically-stable softmax in f32; normalize after the PV matmul so the
    # reciprocal is applied to an [N, Dh] tile instead of [N, N].
    m = jnp.max(s, axis=-1, keepdims=True)
    p = jnp.exp(s - m)
    l = jnp.sum(p, axis=-1, keepdims=True)

    o = jnp.dot(p.astype(v.dtype), v, preferred_element_type=jnp.float32)
    o = o * pl.reciprocal(l, approx=True)
    o_ref[0] = o.astype(o_ref.dtype)


def attention_core(q, k, v, scale, *, out_dtype=None):
    """q, k, v: [B*H, N, Dh] -> softmax(q k^T * scale) v : [B*H, N, Dh]."""
    BH, N, Dh = q.shape
    out_dtype = out_dtype if out_dtype is not None else q.dtype

    # TODO(synk): for very long sequences (N^2 f32 scores exceeding VMEM) a
    # flash-style kv-tiled online-softmax variant would be needed; ViTDet
    # window / global block sizes fit comfortably in one block per head.
    cost = pl.CostEstimate(
        flops=4 * BH * N * N * Dh,
        transcendentals=BH * N * N,
        bytes_accessed=(3 * BH * N * Dh * q.dtype.itemsize
                        + BH * N * Dh * jnp.dtype(out_dtype).itemsize),
    )

    kernel = functools.partial(_attention_kernel, scale=scale)
    return pl.pallas_call(
        kernel,
        out_shape=jax.ShapeDtypeStruct((BH, N, Dh), out_dtype),
        grid_spec=pltpu.PrefetchScalarGridSpec(
            num_scalar_prefetch=0,
            grid=(BH,),
            in_specs=[
                pl.BlockSpec((1, N, Dh), lambda i: (i, 0, 0)),
                pl.BlockSpec((1, N, Dh), lambda i: (i, 0, 0)),
                pl.BlockSpec((1, N, Dh), lambda i: (i, 0, 0)),
            ],
            out_specs=pl.BlockSpec((1, N, Dh), lambda i: (i, 0, 0)),
        ),
        compiler_params=pltpu.CompilerParams(
            dimension_semantics=("parallel",),
            vmem_limit_bytes=64 * 1024 * 1024,
        ),
        cost_estimate=cost,
    )(q, k, v)


# ---------------------------------------------------------------------------
# Full Attention.forward
# ---------------------------------------------------------------------------
def attention_forward(x, w_qkv, b_qkv, w_proj, b_proj, num_heads,
                      compute_dtype=jnp.bfloat16):
    """
    x:      [B, N, C]
    w_qkv:  [C, 3C]  (pre-transposed from PyTorch's [3C, C])
    b_qkv:  [3C] or None (qkv_bias=False)
    w_proj: [C, C]   (pre-transposed)
    b_proj: [C]
    Returns [B, N, C] in x.dtype.
    """
    B, N, C = x.shape
    H = num_heads
    Dh = C // H
    scale = float(Dh) ** -0.5

    if b_qkv is None:
        b_qkv = jnp.zeros((3 * C,), jnp.float32)

    # 1) QKV projection (bf16 MXU inputs, f32 accumulation).
    xc = x.reshape(B * N, C).astype(compute_dtype)
    qkv = matmul_bias(xc, w_qkv.astype(compute_dtype), b_qkv,
                      out_dtype=compute_dtype)                 # [B*N, 3C]

    # 2) Split heads: [B, N, 3, H, Dh] -> [3, B, H, N, Dh]
    qkv = qkv.reshape(B, N, 3, H, Dh)
    qkv = jnp.transpose(qkv, (2, 0, 3, 1, 4))
    q = qkv[0].reshape(B * H, N, Dh)
    k = qkv[1].reshape(B * H, N, Dh)
    v = qkv[2].reshape(B * H, N, Dh)

    # 3) Fused scaled-dot-product attention per (batch, head).
    o = attention_core(q, k, v, scale, out_dtype=compute_dtype)  # [B*H, N, Dh]
    o = o.reshape(B, H, N, Dh).transpose(0, 2, 1, 3).reshape(B * N, C)

    # 4) Output projection, back to the input dtype.
    out = matmul_bias(o, w_proj.astype(compute_dtype), b_proj, out_dtype=x.dtype)
    return out.reshape(B, N, C)


if __name__ == "__main__":
    # Small shapes consistent with the module: B=2, seq N=8, dim C=32, 8 heads.
    B, N, C = 2, 8, 32
    H = 8  # head_dim = 4

    key = jax.random.PRNGKey(0)
    kx, kq, kp, kb = jax.random.split(key, 4)
    x = jax.random.normal(kx, (B, N, C), dtype=jnp.float32)
    # Weights stored [in, out] (i.e. nn.Linear weight already transposed).
    w_qkv = jax.random.normal(kq, (C, 3 * C), dtype=jnp.float32) * 0.02
    w_proj = jax.random.normal(kp, (C, C), dtype=jnp.float32) * 0.02
    b_proj = jax.random.normal(kb, (C,), dtype=jnp.float32) * 0.01
    b_qkv = None  # qkv_bias=False (module default)

    out = attention_forward(x, w_qkv, b_qkv, w_proj, b_proj, H)
    out = jax.block_until_ready(out)

    # Plain-JAX f32 reference of the same forward.
    Dh = C // H
    scale = Dh ** (-0.5)
    qkv_ref = (x @ w_qkv).reshape(B, N, 3, H, Dh)
    qkv_ref = jnp.transpose(qkv_ref, (2, 0, 3, 1, 4))
    q_r, k_r, v_r = qkv_ref[0], qkv_ref[1], qkv_ref[2]
    attn = (q_r * scale) @ jnp.swapaxes(k_r, -2, -1)
    attn = jax.nn.softmax(attn, axis=-1)
    ref = jnp.swapaxes(attn @ v_r, 1, 2).reshape(B, N, C) @ w_proj + b_proj

    assert out.shape == (B, N, C)
    # bf16 MXU inputs with f32 accumulation -> loosened tolerance.
    err = float(jnp.max(jnp.abs(out - ref)))
    assert jnp.allclose(out, ref, atol=5e-3, rtol=5e-2), f"max abs err {err}"

    print("KERNEL_OK")
</pallas_src>

<mosaic_0001>
module attributes {stable_mosaic.version = 11 : i64} {
  func.func @_matmul_bias_kernel(%arg0: i32, %arg1: memref<16x32xbf16, #tpu.memory_space<vmem>>, %arg2: memref<32x96xbf16, #tpu.memory_space<vmem>>, %arg3: memref<1x96xf32, #tpu.memory_space<vmem>>, %arg4: memref<16x96xbf16, #tpu.memory_space<vmem>>) attributes {dimension_semantics = [#tpu.dimension_semantics<parallel>], iteration_bounds = array<i64: 1>, scalar_prefetch = 0 : i64, scratch_operands = 0 : i64, tpu.core_type = #tpu.core_type<tc>, window_params = [{transform_indices = @transform_0, window_bounds = array<i64: 16, 32>}, {pipeline_mode = #tpu.pipeline_mode<synchronous>, transform_indices = @transform_1, window_bounds = array<i64: 32, 96>}, {pipeline_mode = #tpu.pipeline_mode<synchronous>, transform_indices = @transform_2, window_bounds = array<i64: 1, 96>}, {transform_indices = @transform_3, window_bounds = array<i64: 16, 96>}]} {
    %c0 = arith.constant 0 : index
    %c0_0 = arith.constant 0 : index
    %0 = vector.load %arg1[%c0, %c0_0] : memref<16x32xbf16, #tpu.memory_space<vmem>>, vector<16x32xbf16>
    %c0_1 = arith.constant 0 : index
    %c0_2 = arith.constant 0 : index
    %1 = vector.load %arg2[%c0_1, %c0_2] : memref<32x96xbf16, #tpu.memory_space<vmem>>, vector<32x96xbf16>
    %cst = arith.constant dense<0.000000e+00> : vector<16x96xf32>
    %2 = tpu.matmul %0, %1, %cst {dimension_numbers = #tpu.dot_dimension_numbers<[1], [0], [0], [1], [0, 0, 1, 1], [], []>} : vector<16x32xbf16>, vector<32x96xbf16>, vector<16x96xf32> -> vector<16x96xf32>
    %c0_3 = arith.constant 0 : index
    %c0_4 = arith.constant 0 : index
    %3 = vector.load %arg3[%c0_3, %c0_4] : memref<1x96xf32, #tpu.memory_space<vmem>>, vector<1x96xf32>
    %4 = vector.broadcast %3 : vector<1x96xf32> to vector<16x96xf32>
    %5 = arith.addf %2, %4 : vector<16x96xf32>
    %6 = arith.truncf %5 : vector<16x96xf32> to vector<16x96xbf16>
    %c0_5 = arith.constant 0 : index
    %c0_6 = arith.constant 0 : index
    %7 = vector.load %arg4[%c0_5, %c0_6] : memref<16x96xbf16, #tpu.memory_space<vmem>>, vector<16x96xbf16>
    tpu.vector_store %arg4[%c0_5, %c0_6], %6 {strides = array<i32>} : memref<16x96xbf16, #tpu.memory_space<vmem>>, vector<16x96xbf16>,
    return
  }
  func.func @transform_0(%arg0: i32) -> (i32, i32) {
    %c0_i32 = arith.constant 0 : i32
    %c0_i32_0 = arith.constant 0 : i32
    return %arg0, %c0_i32 : i32, i32
  }
  func.func @transform_1(%arg0: i32) -> (i32, i32) {
    %c0_i32 = arith.constant 0 : i32
    %c0_i32_0 = arith.constant 0 : i32
    %c0_i32_1 = arith.constant 0 : i32
    return %c0_i32, %c0_i32_0 : i32, i32
  }
  func.func @transform_2(%arg0: i32) -> (i32, i32) {
    %c0_i32 = arith.constant 0 : i32
    %c0_i32_0 = arith.constant 0 : i32
    %c0_i32_1 = arith.constant 0 : i32
    return %c0_i32, %c0_i32_0 : i32, i32
  }
  func.func @transform_3(%arg0: i32) -> (i32, i32) {
    %c0_i32 = arith.constant 0 : i32
    %c0_i32_0 = arith.constant 0 : i32
    return %arg0, %c0_i32 : i32, i32
  }
}

</mosaic_0001>

<llo_original>
// kernel: tpu_custom_call.1
$region0: #{tpu_custom_call.1}
  #allocation0 [shape = 'u32[]', space=smem, size = 0x4, offset = 0x4, fixed_abs, tag = 'smem constant byte address 0x4 - core index']
  #allocation1 [shape = 'u32[144,128]{1,0:T(1,128)}', space=vmem, size = 0x12000, scoped, tag = 'internal scratch']
  %s0 = inlined_call_operand.hbm [shape: bf16[16,32], index: 0, kind: input, shape index: {}]
  %s1 = inlined_call_operand.hbm [shape: bf16[32,96], index: 1, kind: input, shape index: {}]
  %s2 = inlined_call_operand.hbm [shape: f32[1,96], index: 2, kind: input, shape index: {}]
  %s3 = inlined_call_operand.hbm [shape: bf16[16,96], index: 3, kind: output, shape index: {}]
  %s4 = sld [smem:[#allocation0]]
  $region34: #{tpu_custom_call.1} parent=0
    _
  %s6 = ssub.s32 1, %s4
  %s7 = scalar_select 0, %s6, %s4
  $region1: #{tpu_custom_call.1} parent=0
    #allocation2 [shape = 'u8[4096]{0}', space=vmem, size = 0x1000, scoped, tag = 'input window, operand 0, single buffered']
    #allocation3 [shape = 's32[1]{0}', space=sflag, size = 0x4, scoped, tag = 'scoped memory for tpu_custom_call.1']
    #allocation4 [shape = 's32[1]{0}', space=sflag, size = 0x4, scoped, tag = 'scoped memory for tpu_custom_call.1']
    #allocation5 [shape = 'u8[8192]{0}', space=vmem, size = 0x2000, scoped, tag = 'input window, operand 1, single buffered']
    #allocation6 [shape = 's32[1]{0}', space=sflag, size = 0x4, scoped, tag = 'scoped memory for tpu_custom_call.1']
    #allocation7 [shape = 'u8[512]{0}', space=vmem, size = 0x400, scoped, tag = 'input window, operand 2, single buffered']
    #allocation8 [shape = 'u8[4096]{0}', space=vmem, size = 0x1000, scoped, tag = 'output window, operand 0, single buffered']
    %8 = vsyncpa [#allocation3], 0
    %9 = vsyncpa [#allocation6], 0
    %10 = vsyncpa [#allocation4], 0
    // Predicated region
    $region2: #{tpu_custom_call.1} parent=1 // pred_check
      _
    $region3: #{tpu_custom_call.1} parent=1 // pred_check_branch
      %12 = sbr.rel (0) target = $region5
    $region4: #{tpu_custom_call.1} parent=1 // pred_region
      %s14 = ssub.s32 128, 128
      %15 = vsyncadd [#allocation3], %s14
      %s16 = sshll.u32 [#allocation2], 4
      %s17 = int_to_ptr.vmem [resolvable:$true] %s16
      %22 = dma.hbm_to_vmem [thread:$0]  %s0, 128, %s17, [#allocation3], 64, 64, 4
    $region5: #{tpu_custom_call.1} parent=1 // pred_fallthru
      _
    // Predicated region
    $region6: #{tpu_custom_call.1} parent=1 // pred_check
      _
    $region7: #{tpu_custom_call.1} parent=1 // pred_check_branch
      %24 = sbr.rel (0) target = $region9
    $region8: #{tpu_custom_call.1} parent=1 // pred_region
      %s26 = ssub.s32 256, 256
      %27 = vsyncadd [#allocation6], %s26
      %s28 = sshll.u32 [#allocation5], 4
      %s29 = int_to_ptr.vmem [resolvable:$true] %s28
      %34 = dma.hbm_to_vmem [thread:$0]  %s1, 256, %s29, [#allocation6], 64, 64, 4
    $region9: #{tpu_custom_call.1} parent=1 // pred_fallthru
      _
    // Predicated region
    $region10: #{tpu_custom_call.1} parent=1 // pred_check
      _
    $region11: #{tpu_custom_call.1} parent=1 // pred_check_branch
      %36 = sbr.rel (0) target = $region13
    $region12: #{tpu_custom_call.1} parent=1 // pred_region
      %s38 = ssub.s32 16, 16
      %39 = vsyncadd [#allocation6], %s38
      %s41 = sshll.u32 [#allocation7], 4
      %s42 = int_to_ptr.vmem [resolvable:$true] %s41
      %44 = dma.hbm_to_vmem [thread:$0]  %s2, 16, %s42, [#allocation6]
    $region13: #{tpu_custom_call.1} parent=1 // pred_fallthru
      _
    // Predicated region
    $region14: #{tpu_custom_call.1} parent=1 // pred_check
      _
    $region15: #{tpu_custom_call.1} parent=1 // pred_check_branch
      %46 = sbr.rel (0) target = $region17
    $region16: #{tpu_custom_call.1} parent=1 // pred_region
      %47 = dma.done [#allocation3], 128
    $region17: #{tpu_custom_call.1} parent=1 // pred_fallthru
      _
    // Predicated region
    $region18: #{tpu_custom_call.1} parent=1 // pred_check
      _
    $region19: #{tpu_custom_call.1} parent=1 // pred_check_branch
      %49 = sbr.rel (0) target = $region21
    $region20: #{tpu_custom_call.1} parent=1 // pred_region
      %50 = dma.done [#allocation6], 256
    $region21: #{tpu_custom_call.1} parent=1 // pred_fallthru
      _
    // Predicated region
    $region22: #{tpu_custom_call.1} parent=1 // pred_check
      _
    $region23: #{tpu_custom_call.1} parent=1 // pred_check_branch
      %52 = sbr.rel (0) target = $region25
    $region24: #{tpu_custom_call.1} parent=1 // pred_region
      %53 = dma.done [#allocation6], 16
    $region25: #{tpu_custom_call.1} parent=1 // pred_fallthru
      _
    %v55 = vld [vmem:[#allocation2] sm:$0xf]
    %v56 = vld [vmem:[#allocation2 + $0x4] sm:$0xf]
    %v57 = vld [vmem:[#allocation5] sm:$0xf]
    %v58 = vld [vmem:[#allocation5 + $0x4] sm:$0xf]
    %v59 = vld [vmem:[#allocation5 + $0x8] sm:$0xf]
    %v60 = vld [vmem:[#allocation5 + $0xc] sm:$0xf]
    %v61 = vld [vmem:[#allocation7] sm:$0x1]
    %v63 = vlaneseq
    %v64 = vshrl.u32 %v63, 7
    %v65 = vsub.s32 0, %v64
    %v66 = vrot.slane %v61, %v65
    %v70 = vunpack.c.l.b16 %v55
    %v71 = vunpack.c.l.b16 %v56
    %v72 = vpack.c.b16 %v71, %v70
    %v77 = vunpack.c.l.b16 %v57
    %v78 = vunpack.c.l.b16 %v58
    %v79 = vunpack.c.l.b16 %v59
    %v80 = vunpack.c.l.b16 %v60
    %v81 = vpack.c.b16 %v78, %v77
    %v82 = vpack.c.b16 %v80, %v79
    %vm85 = vcmask 261120
    %v87 = vsel %vm85, %v72, 0
    %89 = vmatprep.subr.bf16.mxu0 0
    %90 = vmatpush1.bf16.msra.mxu0 %v81
    %91 = vmatprep.subr.bf16.mxu0 0
    %92 = vmatpush1.bf16.msra.mxu0 %v82
    %93 = vmatprep.subr.bf16.mxu0 0
    %94 = vmatpush1.bf16.msra.mxu0 0
    %95 = vmatprep.subr.bf16.mxu0 0
    %96 = vmatpush1.bf16.msra.mxu0 0
    %97 = vmatprep.subr.bf16.mxu0 0
    %98 = vmatpush1.bf16.msra.mxu0 0
    %99 = vmatprep.subr.bf16.mxu0 0
    %100 = vmatpush1.bf16.msra.mxu0 0
    %101 = vmatprep.subr.bf16.mxu0 0
    %102 = vmatpush1.bf16.msra.mxu0 0
    %103 = vmatprep.subr.bf16.mxu0 0
    %104 = vmatpush1.bf16.msra.mxu0 0
    %105 = vmatprep.subr.bf16.mxu0 0
    %106 = vmatpush1.bf16.msra.mxu0 0
    %107 = vmatprep.subr.bf16.mxu0 0
    %108 = vmatpush1.bf16.msra.mxu0 0
    %109 = vmatprep.subr.bf16.mxu0 0
    %110 = vmatpush1.bf16.msra.mxu0 0
    %111 = vmatprep.subr.bf16.mxu0 0
    %112 = vmatpush1.bf16.msra.mxu0 0
    %113 = vmatprep.subr.bf16.mxu0 0
    %114 = vmatpush1.bf16.msra.mxu0 0
    %115 = vmatprep.subr.bf16.mxu0 0
    %116 = vmatpush1.bf16.msra.mxu0 0
    %117 = vmatprep.subr.bf16.mxu0 0
    %118 = vmatpush1.bf16.msra.mxu0 0
    %119 = vmatprep.subr.bf16.mxu0 0
    %120 = vmatpush1.bf16.msra.mxu0 0
    %121 = vmatprep.mubr.bf16.mxu0 0
    %122 = vmatmul.mubr.bf16.gmra.mrb[0].mxu0 %v87
    %v123 = vpop.f32.mrb[0].mxu0
    %v124 = vadd.f32 %v66, %v123
    %v125 = vpop.f32.mrb[0].mxu0
    %v126 = vpop.f32.mrb[0].mxu0
    %v127 = vadd.f32 %v66, %v126
    %v128 = vpop.f32.mrb[0].mxu0
    %129 = vdwg.mxu0
    %v130 = vpack.c.bf16 %v127, %v124
    %v132 = vunpack.c.l.b16 %v130
    %v133 = vunpack.c.h.b16 %v130
    %v134 = vpack.c.b16 %v132, %v132
    %v135 = vpack.c.b16 %v133, %v133
    %vm138 = vcmask 781312
    %139 = vst.msk [vmem:[#allocation8] sm:$0xf] %vm138, %v134
    %140 = vst.msk [vmem:[#allocation8 + $0x4] sm:$0xf] %vm138, %v135
    // Predicated region
    $region26: #{tpu_custom_call.1} parent=1 // pred_check
      _
    $region27: #{tpu_custom_call.1} parent=1 // pred_check_branch
      %142 = sbr.rel (0) target = $region29
    $region28: #{tpu_custom_call.1} parent=1 // pred_region
      %s144 = ssub.s32 128, 128
      %145 = vsyncadd [#allocation4], %s144
      %s146 = sshll.u32 [#allocation8], 4
      %s147 = int_to_ptr.vmem [resolvable:$true] %s146
      %152 = dma.vmem_to_hbm [thread:$0]  %s147, 128, %s3, [#allocation4], 64, 64, 4
    $region29: #{tpu_custom_call.1} parent=1 // pred_fallthru
      _
    // Predicated region
    $region30: #{tpu_custom_call.1} parent=1 // pred_check
      _
    $region31: #{tpu_custom_call.1} parent=1 // pred_check_branch
      %154 = sbr.rel (0) target = $region33
    $region32: #{tpu_custom_call.1} parent=1 // pred_region
      %155 = dma.done [#allocation4], 128
    $region33: #{tpu_custom_call.1} parent=1 // pred_fallthru
      _
    %156 = vsyncpa [#allocation3], 1
    %157 = vsyncpa [#allocation6], 1
    %158 = vsyncpa [#allocation4], 1

</llo_original>
